<compile_context>
chip_gen: v7x
topology: tpu7x:2x2x1
jax: 0.10.0
libtpu: 0.0.40
codegen_flags: <defaults>
</compile_context>

<pallas_src>
import functools

import jax
import jax.numpy as jnp
from jax import lax
from jax.experimental import pallas as pl
from jax.experimental.pallas import tpu as pltpu


def _round_up(a, m):
    return (a + m - 1) // m * m


# ----------------------------------------------------------------------------
# Pallas kernel: fused im2col + single-K matmul + bias + ReLU (NB images/step)
# ----------------------------------------------------------------------------
def _conv_bias_relu_kernel(x_ref, w_ref, b_ref, o_ref, rhs_ref, *,
                           taps, nb, cin, npix_pad):
    # x_ref:   (NB, Cin, P_pad)   flattened zero-padded image slabs
    # w_ref:   (Cout, K)          K = KH*KW*Cin, tap-major / channel-minor
    # b_ref:   (Cout, 1)          bias, f32
    # o_ref:   (NB, Cout, NPIX)   dense stride-1 conv outputs, lane-padded
    # rhs_ref: (K, NPIX) f32      VMEM scratch: stacked (im2col) RHS
    w = w_ref[...]
    b = b_ref[...]
    for n in range(nb):                                # static unroll, nb small
        xv = x_ref[n].astype(jnp.float32)              # (Cin, P_pad)
        # Build the stacked RHS: row block t = tap-(kh,kw) shifted slab slice.
        for t, s in enumerate(taps):
            rhs_ref[t * cin:(t + 1) * cin, :] = xv[:, s:s + npix_pad]
        rhs = rhs_ref[...].astype(w.dtype)             # (K, NPIX)
        # One MXU matmul with K = KH*KW*Cin (accumulation inside the MXU).
        acc = jnp.dot(w, rhs, preferred_element_type=jnp.float32)
        out = jnp.maximum(acc + b, 0.0)                # bias + ReLU in f32
        o_ref[n] = out.astype(o_ref.dtype)


def _fused_conv_bias_relu(x2, w2, b2, *, taps, nb, npix_pad, out_dtype):
    """x2: (Np, Cin, P_pad) slabs (Np divisible by nb), w2: (Cout, K),
    b2: (Cout, 1) f32 -> (Np, Cout, NPIX) dense stride-1 conv + bias + ReLU."""
    n_imgs, cin, p_pad = x2.shape
    cout, k = w2.shape
    assert n_imgs % nb == 0
    grid = (n_imgs // nb,)
    kernel = functools.partial(_conv_bias_relu_kernel, taps=taps, nb=nb,
                               cin=cin, npix_pad=npix_pad)
    return pl.pallas_call(
        kernel,
        out_shape=jax.ShapeDtypeStruct((n_imgs, cout, npix_pad), out_dtype),
        grid_spec=pltpu.PrefetchScalarGridSpec(
            num_scalar_prefetch=0,
            grid=grid,                                        # NB images / step
            in_specs=[
                pl.BlockSpec((nb, cin, p_pad), lambda g: (g, 0, 0)),  # slabs
                pl.BlockSpec((cout, k), lambda g: (0, 0)),            # weights
                pl.BlockSpec((cout, 1), lambda g: (0, 0)),            # bias
            ],
            out_specs=pl.BlockSpec((nb, cout, npix_pad), lambda g: (g, 0, 0)),
            scratch_shapes=[pltpu.VMEM((k, npix_pad), jnp.float32)],
        ),
        compiler_params=pltpu.CompilerParams(
            dimension_semantics=("parallel",)),               # megacore over N
    )(x2, w2, b2)


# ----------------------------------------------------------------------------
# Block module (JAX wrapper)
# ----------------------------------------------------------------------------
class BlockPallas:
    """Pallas equivalent of the PyTorch Block (Conv2d + Dropout2d + ReLU)."""

    def __init__(self, in_channels, out_channels, kernel_size,
                 stride=1, padding=0, prob_dropout=0.2,
                 compute_dtype=jnp.float32, key=None):
        if isinstance(kernel_size, int):
            kernel_size = (kernel_size, kernel_size)
        if isinstance(stride, int):
            stride = (stride, stride)
        if isinstance(padding, int):
            padding = (padding, padding)
        self.cin, self.cout = in_channels, out_channels
        self.kh, self.kw = kernel_size
        self.sh, self.sw = stride
        self.ph, self.pw = padding
        self.prob_dropout = prob_dropout            # eval-mode: identity
        self.compute_dtype = jnp.dtype(compute_dtype)

        # xavier_uniform_ weight (Cout, Cin, KH, KW), zero bias — matches the
        # PyTorch module's init (nn.init.xavier_uniform_ / nn.init.zeros_).
        key = jax.random.PRNGKey(0) if key is None else key
        fan_in = in_channels * self.kh * self.kw
        fan_out = out_channels * self.kh * self.kw
        bound = jnp.sqrt(6.0 / (fan_in + fan_out))
        self.weight = jax.random.uniform(
            key, (out_channels, in_channels, self.kh, self.kw),
            minval=-bound, maxval=bound, dtype=jnp.float32)
        self.bias = jnp.zeros((out_channels,), jnp.float32)

        # Hoisted weight repack (done once, not per call): fused-K layout
        # (Cout, KH*KW*Cin), tap-major / channel-minor, matching the in-kernel
        # RHS stacking order.  bf16 cast (valid on v5e/v6e/v7x MXUs) also here.
        w2 = jnp.transpose(self.weight, (0, 2, 3, 1)).reshape(
            self.cout, self.kh * self.kw * self.cin)
        if self.compute_dtype == jnp.dtype(jnp.bfloat16):
            w2 = w2.astype(jnp.bfloat16)
        self.w2 = w2
        self.b2 = self.bias.reshape(self.cout, 1)   # f32 epilogue

    @staticmethod
    def _images_per_step(n):
        # Amortize the ~0.35 us per-grid-step overhead, but keep >= 2 grid
        # steps so both v7x TensorCores stay busy.
        if n <= 2:
            return 1
        return max(1, min(8, n // 2))

    def __call__(self, x_nchw):
        # layout: input NCHW (PyTorch), output NCHW — no transposes anywhere.
        N, C, H, W = x_nchw.shape
        assert C == self.cin
        HP, WP = H + 2 * self.ph, W + 2 * self.pw
        OH1, OW1 = HP - self.kh + 1, WP - self.kw + 1   # dense (stride-1) extents
        OH = (HP - self.kh) // self.sh + 1
        OW = (WP - self.kw) // self.sw + 1

        npix = OH1 * WP                                  # real dense-conv columns
        npix_pad = _round_up(npix, 128)                  # lane-dense output stores
        s_max = (self.kh - 1) * WP + (self.kw - 1)       # largest tap offset
        p_pad = _round_up(s_max + npix_pad, 128)         # slab length (all taps in range)

        # Zero-pad spatially, flatten per channel to a pixel slab, then pad the
        # slab tail with zeros so every tap slice of length npix_pad is in
        # bounds (tail zeros only feed discarded seam/pad columns).  Under jit
        # XLA fuses pad + reshape + convert into one producer pass.
        xp = jnp.pad(x_nchw, ((0, 0), (0, 0),
                              (self.ph, self.ph), (self.pw, self.pw)))
        x2 = xp.reshape(N, self.cin, HP * WP)
        x2 = jnp.pad(x2, ((0, 0), (0, 0), (0, p_pad - HP * WP)))
        if self.compute_dtype == jnp.dtype(jnp.bfloat16):
            x2 = x2.astype(jnp.bfloat16)                 # halves slab HBM reads

        # Batch NB images per grid step; pad the batch so it divides evenly.
        nb = self._images_per_step(N)
        n_pad = _round_up(N, nb)
        if n_pad > N:
            x2 = jnp.pad(x2, ((0, n_pad - N), (0, 0), (0, 0)))

        taps = tuple(kh_i * WP + kw_i
                     for kh_i in range(self.kh) for kw_i in range(self.kw))

        # Hot path: fused im2col + conv (dense stride-1) + bias + ReLU.
        out = _fused_conv_bias_relu(x2, self.w2, self.b2, taps=taps, nb=nb,
                                    npix_pad=npix_pad, out_dtype=jnp.float32)

        # TODO(synk): Dropout2d is identity here (eval mode); training-mode
        # per-channel masking with 1/(1-p) scaling is not implemented.

        # (Np, Cout, NPIX) -> keep N real images and npix real columns, reshape
        # to (N, Cout, OH1, WP); drop the seam columns and apply the stride by
        # subsampling the dense conv result (strided conv == dense conv
        # subsampled).  Already NCHW — XLA fuses this into the output copy.
        y = out[:N, :, :npix].reshape(N, self.cout, OH1, WP)
        y = y[:, :, 0:OH1:self.sh, 0:OW1:self.sw]
        assert y.shape == (N, self.cout, OH, OW)
        return y


# ----------------------------------------------------------------------------
# main
# ----------------------------------------------------------------------------
if __name__ == "__main__":
    key = jax.random.PRNGKey(0)
    kx, kparam = jax.random.split(key)

    N, Cin, H, W = 2, 4, 16, 16
    Cout, ksize, stride, padding = 8, 3, 1, 1

    x = jax.random.normal(kx, (N, Cin, H, W), dtype=jnp.float32)

    # Reference: plain-JAX conv (NCHW, OIHW) + bias + ReLU.
    block = BlockPallas(Cin, Cout, ksize, stride, padding, key=kparam)
    ref = lax.conv_general_dilated(
        x, block.weight, window_strides=(stride, stride),
        padding=((padding, padding), (padding, padding)),
        dimension_numbers=("NCHW", "OIHW", "NCHW"))
    ref = jnp.maximum(ref + block.bias[None, :, None, None], 0.0)

    # --- f32 path (exact semantics of the PyTorch module) --------------------
    y = jax.jit(lambda v: block(v))(x)
    y = jax.block_until_ready(y)
    assert y.shape == (N, Cout, H, W), y.shape
    assert jnp.allclose(y, ref, atol=1e-4, rtol=1e-4), float(
        jnp.max(jnp.abs(y - ref)))

    # --- bf16 compute path (valid on v5e/v6e/v7x; f32 accumulate/epilogue) ---
    block_bf16 = BlockPallas(Cin, Cout, ksize, stride, padding, key=kparam,
                             compute_dtype=jnp.bfloat16)
    y16 = jax.jit(lambda v: block_bf16(v))(x)
    y16 = jax.block_until_ready(y16)
    assert y16.shape == (N, Cout, H, W), y16.shape
    assert jnp.allclose(y16, ref, atol=5e-2, rtol=5e-2), float(
        jnp.max(jnp.abs(y16 - ref)))

    print("KERNEL_OK")
</pallas_src>

<mosaic_0001>
module attributes {stable_mosaic.version = 11 : i64} {
  func.func @_conv_bias_relu_kernel(%arg0: i32, %arg1: memref<1x4x512xf32, #tpu.memory_space<vmem>>, %arg2: memref<8x36xf32, #tpu.memory_space<vmem>>, %arg3: memref<8x1xf32, #tpu.memory_space<vmem>>, %arg4: memref<1x8x384xf32, #tpu.memory_space<vmem>>, %arg5: memref<36x384xf32, #tpu.memory_space<vmem>>) attributes {dimension_semantics = [#tpu.dimension_semantics<parallel>], iteration_bounds = array<i64: 2>, scalar_prefetch = 0 : i64, scratch_operands = 1 : i64, tpu.core_type = #tpu.core_type<tc>, window_params = [{transform_indices = @transform_0, window_bounds = array<i64: 1, 4, 512>}, {pipeline_mode = #tpu.pipeline_mode<synchronous>, transform_indices = @transform_1, window_bounds = array<i64: 8, 36>}, {pipeline_mode = #tpu.pipeline_mode<synchronous>, transform_indices = @transform_2, window_bounds = array<i64: 8, 1>}, {transform_indices = @transform_3, window_bounds = array<i64: 1, 8, 384>}]} {
    %c0 = arith.constant 0 : index
    %c0_0 = arith.constant 0 : index
    %0 = vector.load %arg2[%c0, %c0_0] : memref<8x36xf32, #tpu.memory_space<vmem>>, vector<8x36xf32>
    %c0_1 = arith.constant 0 : index
    %c0_2 = arith.constant 0 : index
    %1 = vector.load %arg3[%c0_1, %c0_2] : memref<8x1xf32, #tpu.memory_space<vmem>>, vector<8x1xf32>
    %c0_3 = arith.constant 0 : index
    %c0_4 = arith.constant 0 : index
    %c0_5 = arith.constant 0 : index
    %2 = vector.load %arg1[%c0_3, %c0_4, %c0_5] : memref<1x4x512xf32, #tpu.memory_space<vmem>>, vector<1x4x512xf32>
    %3 = vector.shape_cast %2 : vector<1x4x512xf32> to vector<4x512xf32>
    %4 = vector.extract_strided_slice %3 {offsets = [0, 0], sizes = [4, 384], strides = [1, 1]} : vector<4x512xf32> to vector<4x384xf32>
    %c0_6 = arith.constant 0 : index
    %c0_7 = arith.constant 0 : index
    %5 = vector.load %arg5[%c0_6, %c0_7] : memref<36x384xf32, #tpu.memory_space<vmem>>, vector<4x384xf32>
    tpu.vector_store %arg5[%c0_6, %c0_7], %4 {strides = array<i32>} : memref<36x384xf32, #tpu.memory_space<vmem>>, vector<4x384xf32>,
    %6 = vector.extract_strided_slice %3 {offsets = [0, 1], sizes = [4, 384], strides = [1, 1]} : vector<4x512xf32> to vector<4x384xf32>
    %c4 = arith.constant 4 : index
    %c0_8 = arith.constant 0 : index
    %7 = vector.load %arg5[%c4, %c0_8] : memref<36x384xf32, #tpu.memory_space<vmem>>, vector<4x384xf32>
    tpu.vector_store %arg5[%c4, %c0_8], %6 {strides = array<i32>} : memref<36x384xf32, #tpu.memory_space<vmem>>, vector<4x384xf32>,
    %8 = vector.extract_strided_slice %3 {offsets = [0, 2], sizes = [4, 384], strides = [1, 1]} : vector<4x512xf32> to vector<4x384xf32>
    %c8 = arith.constant 8 : index
    %c0_9 = arith.constant 0 : index
    %9 = vector.load %arg5[%c8, %c0_9] : memref<36x384xf32, #tpu.memory_space<vmem>>, vector<4x384xf32>
    tpu.vector_store %arg5[%c8, %c0_9], %8 {strides = array<i32>} : memref<36x384xf32, #tpu.memory_space<vmem>>, vector<4x384xf32>,
    %10 = vector.extract_strided_slice %3 {offsets = [0, 18], sizes = [4, 384], strides = [1, 1]} : vector<4x512xf32> to vector<4x384xf32>
    %c12 = arith.constant 12 : index
    %c0_10 = arith.constant 0 : index
    %11 = vector.load %arg5[%c12, %c0_10] : memref<36x384xf32, #tpu.memory_space<vmem>>, vector<4x384xf32>
    tpu.vector_store %arg5[%c12, %c0_10], %10 {strides = array<i32>} : memref<36x384xf32, #tpu.memory_space<vmem>>, vector<4x384xf32>,
    %12 = vector.extract_strided_slice %3 {offsets = [0, 19], sizes = [4, 384], strides = [1, 1]} : vector<4x512xf32> to vector<4x384xf32>
    %c16 = arith.constant 16 : index
    %c0_11 = arith.constant 0 : index
    %13 = vector.load %arg5[%c16, %c0_11] : memref<36x384xf32, #tpu.memory_space<vmem>>, vector<4x384xf32>
    tpu.vector_store %arg5[%c16, %c0_11], %12 {strides = array<i32>} : memref<36x384xf32, #tpu.memory_space<vmem>>, vector<4x384xf32>,
    %14 = vector.extract_strided_slice %3 {offsets = [0, 20], sizes = [4, 384], strides = [1, 1]} : vector<4x512xf32> to vector<4x384xf32>
    %c20 = arith.constant 20 : index
    %c0_12 = arith.constant 0 : index
    %15 = vector.load %arg5[%c20, %c0_12] : memref<36x384xf32, #tpu.memory_space<vmem>>, vector<4x384xf32>
    tpu.vector_store %arg5[%c20, %c0_12], %14 {strides = array<i32>} : memref<36x384xf32, #tpu.memory_space<vmem>>, vector<4x384xf32>,
    %16 = vector.extract_strided_slice %3 {offsets = [0, 36], sizes = [4, 384], strides = [1, 1]} : vector<4x512xf32> to vector<4x384xf32>
    %c24 = arith.constant 24 : index
    %c0_13 = arith.constant 0 : index
    %17 = vector.load %arg5[%c24, %c0_13] : memref<36x384xf32, #tpu.memory_space<vmem>>, vector<4x384xf32>
    tpu.vector_store %arg5[%c24, %c0_13], %16 {strides = array<i32>} : memref<36x384xf32, #tpu.memory_space<vmem>>, vector<4x384xf32>,
    %18 = vector.extract_strided_slice %3 {offsets = [0, 37], sizes = [4, 384], strides = [1, 1]} : vector<4x512xf32> to vector<4x384xf32>
    %c28 = arith.constant 28 : index
    %c0_14 = arith.constant 0 : index
    %19 = vector.load %arg5[%c28, %c0_14] : memref<36x384xf32, #tpu.memory_space<vmem>>, vector<4x384xf32>
    tpu.vector_store %arg5[%c28, %c0_14], %18 {strides = array<i32>} : memref<36x384xf32, #tpu.memory_space<vmem>>, vector<4x384xf32>,
    %20 = vector.extract_strided_slice %3 {offsets = [0, 38], sizes = [4, 384], strides = [1, 1]} : vector<4x512xf32> to vector<4x384xf32>
    %c32 = arith.constant 32 : index
    %c0_15 = arith.constant 0 : index
    %21 = vector.load %arg5[%c32, %c0_15] : memref<36x384xf32, #tpu.memory_space<vmem>>, vector<4x384xf32>
    tpu.vector_store %arg5[%c32, %c0_15], %20 {strides = array<i32>} : memref<36x384xf32, #tpu.memory_space<vmem>>, vector<4x384xf32>,
    %c0_16 = arith.constant 0 : index
    %c0_17 = arith.constant 0 : index
    %22 = vector.load %arg5[%c0_16, %c0_17] : memref<36x384xf32, #tpu.memory_space<vmem>>, vector<36x384xf32>
    %cst = arith.constant dense<0.000000e+00> : vector<8x384xf32>
    %23 = tpu.matmul %0, %22, %cst {dimension_numbers = #tpu.dot_dimension_numbers<[1], [0], [0], [1], [0, 0, 1, 1], [], []>} : vector<8x36xf32>, vector<36x384xf32>, vector<8x384xf32> -> vector<8x384xf32>
    %24 = vector.broadcast %1 : vector<8x1xf32> to vector<8x384xf32>
    %25 = arith.addf %23, %24 : vector<8x384xf32>
    %cst_18 = arith.constant 0.000000e+00 : f32
    %26 = vector.broadcast %cst_18 : f32 to vector<8x384xf32>
    %27 = arith.maximumf %25, %26 : vector<8x384xf32>
    %c0_19 = arith.constant 0 : index
    %c0_20 = arith.constant 0 : index
    %c0_21 = arith.constant 0 : index
    %28 = vector.load %arg4[%c0_19, %c0_20, %c0_21] : memref<1x8x384xf32, #tpu.memory_space<vmem>>, vector<1x8x384xf32>
    %29 = vector.shape_cast %28 : vector<1x8x384xf32> to vector<8x384xf32>
    %30 = vector.shape_cast %27 : vector<8x384xf32> to vector<1x8x384xf32>
    tpu.vector_store %arg4[%c0_19, %c0_20, %c0_21], %30 {strides = array<i32>} : memref<1x8x384xf32, #tpu.memory_space<vmem>>, vector<1x8x384xf32>,
    return
  }
  func.func @transform_0(%arg0: i32) -> (i32, i32, i32) {
    %c0_i32 = arith.constant 0 : i32
    %c0_i32_0 = arith.constant 0 : i32
    %c0_i32_1 = arith.constant 0 : i32
    return %arg0, %c0_i32, %c0_i32_0 : i32, i32, i32
  }
  func.func @transform_1(%arg0: i32) -> (i32, i32) {
    %c0_i32 = arith.constant 0 : i32
    %c0_i32_0 = arith.constant 0 : i32
    %c0_i32_1 = arith.constant 0 : i32
    return %c0_i32, %c0_i32_0 : i32, i32
  }
  func.func @transform_2(%arg0: i32) -> (i32, i32) {
    %c0_i32 = arith.constant 0 : i32
    %c0_i32_0 = arith.constant 0 : i32
    %c0_i32_1 = arith.constant 0 : i32
    return %c0_i32, %c0_i32_0 : i32, i32
  }
  func.func @transform_3(%arg0: i32) -> (i32, i32, i32) {
    %c0_i32 = arith.constant 0 : i32
    %c0_i32_0 = arith.constant 0 : i32
    %c0_i32_1 = arith.constant 0 : i32
    return %arg0, %c0_i32, %c0_i32_0 : i32, i32, i32
  }
}

</mosaic_0001>

<llo_original>
// kernel: _lambda_.1
$region0: #{_lambda_.1}
  #allocation0 [shape = 'u32[]', space=smem, size = 0x4, offset = 0x4, fixed_abs, tag = 'smem constant byte address 0x4 - core index']
  #allocation1 [shape = 'u32[144,128]{1,0:T(1,128)}', space=vmem, size = 0x12000, scoped, tag = 'internal scratch']
  #allocation2 [shape = 'f32[36,384]{1,0:T(8,128)}', space=vmem, size = 0xf000, scoped, tag = 'scratch operand']
  %s0 = inlined_call_operand.vmem [shape: f32[2,4,512], index: 0, kind: input, shape index: {}]
  %s1 = inlined_call_operand.vmem [shape: f32[8,36], index: 1, kind: input, shape index: {}]
  %s2 = inlined_call_operand.vmem [shape: f32[8,1], index: 2, kind: input, shape index: {}]
  %s3 = inlined_call_operand.vmem [shape: f32[2,8,384], index: 3, kind: output, shape index: {}]
  %s4 = sld [smem:[#allocation0]]
  $region45: #{_lambda_.1} parent=0
    _
  %s6 = ssub.s32 1, %s4
  %s7 = scalar_select 0, %s6, %s4
  loop: start=0, step=1, limit=4
  $region2: #{_lambda_.1} parent=0 // loop_pre_header
    _
  $region3: #{_lambda_.1} parent=0 // loop_header
    %s9 = sphi 0, %s13
    %p10 = scmp.ge.s32.totalorder %s9, 4
    %s19 = sphi 0, %s21
    %s22 = sphi 0, %s19
    %s23 = sphi 0, %s22
    %s39 = sphi 0, %s23
    %s43 = sphi 0, %s43
    %s45 = sphi 0, %s43
    %s46 = sphi 0, %s45
    %s60 = sphi 0, %s46
    %s64 = sphi 0, %s64
    %s66 = sphi 0, %s64
    %s67 = sphi 0, %s66
    %s81 = sphi 0, %s67
    %s87 = sphi 0, %s89
    %s90 = sphi 0, %s87
    %s91 = sphi 0, %s90
    %s107 = sphi 0, %s91
  $region4: #{_lambda_.1} parent=0 // loop_header_branch
    %12 = sbr.rel (%p10) target = $region8
  $region5: #{_lambda_.1} parent=0 // loop_body
    %s14 = ssub.s32 %s9, 1
    %s15 = ssub.s32 %s9, 2
    %s16 = sadd.s32 %s9, 1
    %s17 = ssub.s32 %s9, %s16
    %p18 = scmp.eq.s32.totalorder %s17, 0
    %s20 = sadd.s32 %s19, 1
    %s21 = scalar_select %p18, %s19, %s20
    %p24 = pneg %p18
    %p25 = scmp.eq.s32.totalorder %s9, 1
    %p26 = por %p24, %p25
    %p27 = scmp.ne.s32.totalorder %s19, %s22
    %p28 = scmp.eq.s32.totalorder %s9, 0
    %p29 = por %p27, %p28
    %p30 = scmp.ne.s32.totalorder %s19, %s22
    %p31 = scmp.eq.s32.totalorder %s14, 1
    %p32 = por %p30, %p31
    %p33 = scmp.ne.s32.totalorder %s22, %s23
    %p34 = scmp.eq.s32.totalorder %s14, 0
    %p35 = por %p33, %p34
    %p36 = scmp.ne.s32.totalorder %s22, %s23
    %p37 = scmp.eq.s32.totalorder %s15, 1
    %p38 = por %p36, %p37
    %p40 = scmp.ne.s32.totalorder %s23, %s39
    %p41 = scmp.eq.s32.totalorder %s15, 0
    %p42 = por %p40, %p41
    %s44 = sadd.s32 %s43, 1
    %p47 = scmp.eq.s32.totalorder %s9, 1
    %p48 = scmp.ne.s32.totalorder %s43, %s45
    %p49 = scmp.eq.s32.totalorder %s9, 0
    %p50 = por %p48, %p49
    %p51 = scmp.ne.s32.totalorder %s43, %s45
    %p52 = scmp.eq.s32.totalorder %s14, 1
    %p53 = por %p51, %p52
    %p54 = scmp.ne.s32.totalorder %s45, %s46
    %p55 = scmp.eq.s32.totalorder %s14, 0
    %p56 = por %p54, %p55
    %p57 = scmp.ne.s32.totalorder %s45, %s46
    %p58 = scmp.eq.s32.totalorder %s15, 1
    %p59 = por %p57, %p58
    %p61 = scmp.ne.s32.totalorder %s46, %s60
    %p62 = scmp.eq.s32.totalorder %s15, 0
    %p63 = por %p61, %p62
    %s65 = sadd.s32 %s64, 1
    %p68 = scmp.eq.s32.totalorder %s9, 1
    %p69 = scmp.ne.s32.totalorder %s64, %s66
    %p70 = scmp.eq.s32.totalorder %s9, 0
    %p71 = por %p69, %p70
    %p72 = scmp.ne.s32.totalorder %s64, %s66
    %p73 = scmp.eq.s32.totalorder %s14, 1
    %p74 = por %p72, %p73
    %p75 = scmp.ne.s32.totalorder %s66, %s67
    %p76 = scmp.eq.s32.totalorder %s14, 0
    %p77 = por %p75, %p76
    %p78 = scmp.ne.s32.totalorder %s66, %s67
    %p79 = scmp.eq.s32.totalorder %s15, 1
    %p80 = por %p78, %p79
    %p82 = scmp.ne.s32.totalorder %s67, %s81
    %p83 = scmp.eq.s32.totalorder %s15, 0
    %p84 = por %p82, %p83
    %s85 = ssub.s32 %s9, %s16
    %p86 = scmp.eq.s32.totalorder %s85, 0
    %s88 = sadd.s32 %s87, 1
    %s89 = scalar_select %p86, %s87, %s88
    %p92 = pneg %p86
    %p93 = scmp.eq.s32.totalorder %s9, 1
    %p94 = por %p92, %p93
    %p95 = scmp.ne.s32.totalorder %s87, %s90
    %p96 = scmp.eq.s32.totalorder %s9, 0
    %p97 = por %p95, %p96
    %p98 = scmp.ne.s32.totalorder %s87, %s90
    %p99 = scmp.eq.s32.totalorder %s14, 1
    %p100 = por %p98, %p99
    %p101 = scmp.ne.s32.totalorder %s90, %s91
    %p102 = scmp.eq.s32.totalorder %s14, 0
    %p103 = por %p101, %p102
    %p104 = scmp.ne.s32.totalorder %s90, %s91
    %p105 = scmp.eq.s32.totalorder %s15, 1
    %p106 = por %p104, %p105
    %p108 = scmp.ne.s32.totalorder %s91, %s107
    %p109 = scmp.eq.s32.totalorder %s15, 0
    %p110 = por %p108, %p109
    %p111 = scmp.le.s32.totalorder 1, %s9
    %p112 = scmp.lt.s32.totalorder %s9, 3
    %p113 = pnand %p111, %p112
    %p114 = pneg %p113
    // Predicated region
    $region9: #{_lambda_.1} parent=5 // pred_check
      _
    $region10: #{_lambda_.1} parent=5 // pred_check_branch
      %116 = sbr.rel (%p113) target = $region12
    $region11: #{_lambda_.1} parent=5 // pred_region
      %s117 = ssub.s32 %s9, 1
      // Predicated region
      $region13: #{_lambda_.1} parent=11 // pred_check
        %p118 = pneg %p56
      $region14: #{_lambda_.1} parent=11 // pred_check_branch
        %120 = sbr.rel (%p118) target = $region16
      $region15: #{_lambda_.1} parent=11 // pred_region
        _
      $region16: #{_lambda_.1} parent=11 // pred_fallthru
        _
      // Predicated region
      $region17: #{_lambda_.1} parent=11 // pred_check
        %p121 = pneg %p77
      $region18: #{_lambda_.1} parent=11 // pred_check_branch
        %123 = sbr.rel (%p121) target = $region20
      $region19: #{_lambda_.1} parent=11 // pred_region
        _
      $region20: #{_lambda_.1} parent=11 // pred_fallthru
        _
    $region12: #{_lambda_.1} parent=5 // pred_fallthru
      _
    %p124 = scmp.lt.s32.totalorder %s9, 2
    // Predicated region
    $region21: #{_lambda_.1} parent=5 // pred_check
      %p125 = pneg %p124
    $region22: #{_lambda_.1} parent=5 // pred_check_branch
      %127 = sbr.rel (%p125) target = $region24
    $region23: #{_lambda_.1} parent=5 // pred_region
      // Predicated region
      $region25: #{_lambda_.1} parent=23 // pred_check
        %p128 = pneg %p29
      $region26: #{_lambda_.1} parent=23 // pred_check_branch
        %130 = sbr.rel (%p128) target = $region28
      $region27: #{_lambda_.1} parent=23 // pred_region
        %p131 = scmp.lt.s32.totalorder %s9, 1
        %s132 = scalar_select %p131, %s9, 1
        %s133 = smul.addr %s132, 4
        %s134 = smul.addr %s133, 4
        %s135 = scalar_lea.vmem %s0, %s134
      $region28: #{_lambda_.1} parent=23 // pred_fallthru
        _
    $region24: #{_lambda_.1} parent=5 // pred_fallthru
      _
    %p136 = scmp.le.s32.totalorder 1, %s9
    %p137 = scmp.lt.s32.totalorder %s9, 3
    %p138 = pnand %p136, %p137
    %p139 = pneg %p138
    // Predicated region
    $region29: #{_lambda_.1} parent=5 // pred_check
      _
    $region30: #{_lambda_.1} parent=5 // pred_check_branch
      %141 = sbr.rel (%p138) target = $region32
    $region31: #{_lambda_.1} parent=5 // pred_region
      %s142 = ssub.s32 %s9, 1
      %p143 = scmp.lt.s32.totalorder %s14, 1
      %s144 = scalar_select %p143, %s14, 1
      %s145 = smul.addr %s144, 4
      %s146 = smul.addr %s145, 4
      %s147 = scalar_lea.vmem %s0, %s146
      %p148 = pneg %p35
      %p149 = pneg %p32
      %p150 = pneg %p56
      %p151 = pneg %p53
      %p152 = pneg %p77
      %p153 = pneg %p74
      %p154 = pneg %p103
      %p155 = pneg %p100
      %p156 = scmp.lt.s32.totalorder %s14, 1
      %s157 = scalar_select %p156, %s14, 1
      %s158 = smul.addr %s157, 3
      %s159 = smul.addr %s158, 8
      %s160 = scalar_lea.vmem %s3, %s159
      %p161 = scmp.lt.s32.totalorder %s14, 1
      %s162 = scalar_select %p161, %s14, 1
      %s163 = smul.addr %s162, 4
      %s164 = smul.addr %s163, 4
      %s165 = scalar_lea.vmem %s0, %s164
      %p166 = scmp.lt.s32.totalorder %s14, 1
      %s167 = scalar_select %p166, %s14, 1
      %s168 = smul.addr %s167, 3
      %s169 = smul.addr %s168, 8
      %s170 = scalar_lea.vmem %s3, %s169
      %v171 = vld [vmem:[%s1] sm:$0xff]
      %v172 = vld [vmem:[%s2] sm:$0xff]
      %v173 = vld [vmem:[%s165] sm:$0xff]
      %v174 = vld [vmem:[%s165 + $0x8] sm:$0xff]
      %v177 = vcombine.high %v173, %v173
      %179 = vst [vmem:[#allocation2] sm:$0xf] %v173
      %180 = vst [vmem:[#allocation2 + $0x8] sm:$0xf] %v177
      %181 = vst [vmem:[#allocation2 + $0x10] sm:$0xf] %v174
      %v182 = vcombine.low %v173, %v173
      %v183 = vcombine.low %v174, %v174
      %184 = vrot.lane.b32.xlu0 %v182, 127
      %v185 = vpop.permute.xlu0 %184
      %186 = vrot.lane.b32.xlu0 %v173, 127
      %v187 = vpop.permute.xlu0 %186
      %188 = vrot.lane.b32.xlu0 %v183, 127
      %v189 = vpop.permute.xlu0 %188
      %190 = vrot.lane.b32.xlu0 %v174, 127
      %v191 = vpop.permute.xlu0 %190
      %vm192 = vcmask 1039360
      %v193 = vsel %vm192, %v185, %v187
      %v194 = vsel %vm192, %v187, %v189
      %v195 = vsel %vm192, %v189, %v191
      %199 = vst [vmem:[#allocation2] sm:$0xf0] %v193
      %200 = vst [vmem:[#allocation2 + $0x8] sm:$0xf0] %v194
      %201 = vst [vmem:[#allocation2 + $0x10] sm:$0xf0] %v195
      %v202 = vcombine.high %v174, %v174
      %203 = vrot.lane.b32.xlu0 %v173, 126
      %v204 = vpop.permute.xlu0 %203
      %205 = vrot.lane.b32.xlu0 %v177, 126
      %v206 = vpop.permute.xlu0 %205
      %207 = vrot.lane.b32.xlu0 %v174, 126
      %v208 = vpop.permute.xlu0 %207
      %209 = vrot.lane.b32.xlu0 %v202, 126
      %v210 = vpop.permute.xlu0 %209
      %vm211 = vcmask 1031168
      %v212 = vsel %vm211, %v204, %v206
      %v213 = vsel %vm211, %v206, %v208
      %v214 = vsel %vm211, %v208, %v210
      %218 = vst [vmem:[#allocation2 + $0x18] sm:$0xf] %v212
      %219 = vst [vmem:[#allocation2 + $0x20] sm:$0xf] %v213
      %220 = vst [vmem:[#allocation2 + $0x28] sm:$0xf] %v214
      %221 = vrot.lane.b32.xlu0 %v182, 110
      %v222 = vpop.permute.xlu0 %221
      %223 = vrot.lane.b32.xlu0 %v173, 110
      %v224 = vpop.permute.xlu0 %223
      %225 = vrot.lane.b32.xlu0 %v183, 110
      %v226 = vpop.permute.xlu0 %225
      %227 = vrot.lane.b32.xlu0 %v174, 110
      %v228 = vpop.permute.xlu0 %227
      %vm229 = vcmask 900096
      %v230 = vsel %vm229, %v222, %v224
      %v231 = vsel %vm229, %v224, %v226
      %v232 = vsel %vm229, %v226, %v228
      %236 = vst [vmem:[#allocation2 + $0x18] sm:$0xf0] %v230
      %237 = vst [vmem:[#allocation2 + $0x20] sm:$0xf0] %v231
      %238 = vst [vmem:[#allocation2 + $0x28] sm:$0xf0] %v232
      %239 = vrot.lane.b32.xlu0 %v173, 109
      %v240 = vpop.permute.xlu0 %239
      %241 = vrot.lane.b32.xlu0 %v177, 109
      %v242 = vpop.permute.xlu0 %241
      %243 = vrot.lane.b32.xlu0 %v174, 109
      %v244 = vpop.permute.xlu0 %243
      %245 = vrot.lane.b32.xlu0 %v202, 109
      %v246 = vpop.permute.xlu0 %245
      %vm247 = vcmask 891904
      %v248 = vsel %vm247, %v240, %v242
      %v249 = vsel %vm247, %v242, %v244
      %v250 = vsel %vm247, %v244, %v246
      %254 = vst [vmem:[#allocation2 + $0x30] sm:$0xf] %v248
      %255 = vst [vmem:[#allocation2 + $0x38] sm:$0xf] %v249
      %256 = vst [vmem:[#allocation2 + $0x40] sm:$0xf] %v250
      %257 = vrot.lane.b32.xlu0 %v182, 108
      %v258 = vpop.permute.xlu0 %257
      %259 = vrot.lane.b32.xlu0 %v173, 108
      %v260 = vpop.permute.xlu0 %259
      %261 = vrot.lane.b32.xlu0 %v183, 108
      %v262 = vpop.permute.xlu0 %261
      %263 = vrot.lane.b32.xlu0 %v174, 108
      %v264 = vpop.permute.xlu0 %263
      %vm265 = vcmask 883712
      %v266 = vsel %vm265, %v258, %v260
      %v267 = vsel %vm265, %v260, %v262
      %v268 = vsel %vm265, %v262, %v264
      %272 = vst [vmem:[#allocation2 + $0x30] sm:$0xf0] %v266
      %273 = vst [vmem:[#allocation2 + $0x38] sm:$0xf0] %v267
      %274 = vst [vmem:[#allocation2 + $0x40] sm:$0xf0] %v268
      %275 = vrot.lane.b32.xlu0 %v173, 92
      %v276 = vpop.permute.xlu0 %275
      %277 = vrot.lane.b32.xlu0 %v177, 92
      %v278 = vpop.permute.xlu0 %277
      %279 = vrot.lane.b32.xlu0 %v174, 92
      %v280 = vpop.permute.xlu0 %279
      %281 = vrot.lane.b32.xlu0 %v202, 92
      %v282 = vpop.permute.xlu0 %281
      %vm283 = vcmask 752640
      %v284 = vsel %vm283, %v276, %v278
      %v285 = vsel %vm283, %v278, %v280
      %v286 = vsel %vm283, %v280, %v282
      %290 = vst [vmem:[#allocation2 + $0x48] sm:$0xf] %v284
      %291 = vst [vmem:[#allocation2 + $0x50] sm:$0xf] %v285
      %292 = vst [vmem:[#allocation2 + $0x58] sm:$0xf] %v286
      %293 = vrot.lane.b32.xlu0 %v182, 91
      %v294 = vpop.permute.xlu0 %293
      %295 = vrot.lane.b32.xlu0 %v173, 91
      %v296 = vpop.permute.xlu0 %295
      %297 = vrot.lane.b32.xlu0 %v183, 91
      %v298 = vpop.permute.xlu0 %297
      %299 = vrot.lane.b32.xlu0 %v174, 91
      %v300 = vpop.permute.xlu0 %299
      %vm301 = vcmask 744448
      %v302 = vsel %vm301, %v294, %v296
      %v303 = vsel %vm301, %v296, %v298
      %v304 = vsel %vm301, %v298, %v300
      %308 = vst [vmem:[#allocation2 + $0x48] sm:$0xf0] %v302
      %309 = vst [vmem:[#allocation2 + $0x50] sm:$0xf0] %v303
      %310 = vst [vmem:[#allocation2 + $0x58] sm:$0xf0] %v304
      %311 = vrot.lane.b32.xlu0 %v173, 90
      %v312 = vpop.permute.xlu0 %311
      %313 = vrot.lane.b32.xlu0 %v177, 90
      %v314 = vpop.permute.xlu0 %313
      %315 = vrot.lane.b32.xlu0 %v174, 90
      %v316 = vpop.permute.xlu0 %315
      %317 = vrot.lane.b32.xlu0 %v202, 90
      %v318 = vpop.permute.xlu0 %317
      %vm319 = vcmask 736256
      %v320 = vsel %vm319, %v312, %v314
      %v321 = vsel %vm319, %v314, %v316
      %v322 = vsel %vm319, %v316, %v318
      %326 = vst [vmem:[#allocation2 + $0x60] sm:$0xf] %v320
      %327 = vst [vmem:[#allocation2 + $0x68] sm:$0xf] %v321
      %328 = vst [vmem:[#allocation2 + $0x70] sm:$0xf] %v322
      %v329 = vld [vmem:[#allocation2] sm:$0xff]
      %v330 = vld [vmem:[#allocation2 + $0x8] sm:$0xff]
      %v331 = vld [vmem:[#allocation2 + $0x10] sm:$0xff]
      %v332 = vld [vmem:[#allocation2 + $0x18] sm:$0xff]
      %v333 = vld [vmem:[#allocation2 + $0x20] sm:$0xff]
      %v334 = vld [vmem:[#allocation2 + $0x28] sm:$0xff]
      %v335 = vld [vmem:[#allocation2 + $0x30] sm:$0xff]
      %v336 = vld [vmem:[#allocation2 + $0x38] sm:$0xff]
      %v337 = vld [vmem:[#allocation2 + $0x40] sm:$0xff]
      %v338 = vld [vmem:[#allocation2 + $0x48] sm:$0xff]
      %v339 = vld [vmem:[#allocation2 + $0x50] sm:$0xff]
      %v340 = vld [vmem:[#allocation2 + $0x58] sm:$0xff]
      %v341 = vld [vmem:[#allocation2 + $0x60] sm:$0xf]
      %v342 = vld [vmem:[#allocation2 + $0x68] sm:$0xf]
      %v343 = vld [vmem:[#allocation2 + $0x70] sm:$0xf]
      %345 = vset.pattern.permute.xlu0 0
      %346 = vperm.xlu0 %345, %v172
      %v347 = vpop.permute.xlu0 %346
      %vm349 = vcmask 293888
      %v351 = vsel %vm349, %v171, 0
      %vm353 = vcmask 1043456
      %v355 = vsel %vm353, %v341, 0
      %v358 = vsel %vm353, %v342, 0
      %v361 = vsel %vm353, %v343, 0
      %363 = vmatprep.subr.mxu0 %v330
      %364 = vmatpush1.msra.mxu0 %v329
      %365 = vmatprep.subr.mxu0 %v333
      %366 = vmatpush1.msra.mxu0 %v332
      %367 = vmatprep.subr.mxu0 %v336
      %368 = vmatpush1.msra.mxu0 %v335
      %369 = vmatprep.subr.mxu0 %v339
      %370 = vmatpush1.msra.mxu0 %v338
      %371 = vmatprep.subr.mxu0 %v358
      %372 = vmatpush1.msra.mxu0 %v355
      %373 = vmatprep.subr.mxu0 0.0
      %374 = vmatpush1.msra.mxu0 0.0
      %375 = vmatprep.subr.mxu0 0.0
      %376 = vmatpush1.msra.mxu0 0.0
      %377 = vmatprep.subr.mxu0 0.0
      %378 = vmatpush1.msra.mxu0 0.0
      %379 = vmatprep.subr.mxu0 0.0
      %380 = vmatpush1.msra.mxu0 0.0
      %381 = vmatprep.subr.mxu0 0.0
      %382 = vmatpush1.msra.mxu0 0.0
      %383 = vmatprep.subr.mxu0 0.0
      %384 = vmatpush1.msra.mxu0 0.0
      %385 = vmatprep.subr.mxu0 0.0
      %386 = vmatpush1.msra.mxu0 0.0
      %387 = vmatprep.subr.mxu0 0.0
      %388 = vmatpush1.msra.mxu0 0.0
      %389 = vmatprep.subr.mxu0 0.0
      %390 = vmatpush1.msra.mxu0 0.0
      %391 = vmatprep.subr.mxu0 0.0
      %392 = vmatpush1.msra.mxu0 0.0
      %393 = vmatprep.subr.mxu0 0.0
      %394 = vmatpush1.msra.mxu0 0.0
      %395 = vmatprep.subr.mxu0 0.0
      %396 = vmatpush1.msra.mxu0 0.0
      %397 = vmatprep.subr.mxu0 0.0
      %398 = vmatpush1.msra.mxu0 0.0
      %399 = vmatprep.subr.mxu0 0.0
      %400 = vmatpush1.msra.mxu0 0.0
      %401 = vmatprep.subr.mxu0 0.0
      %402 = vmatpush1.msra.mxu0 0.0
      %403 = vmatprep.subr.mxu0 0.0
      %404 = vmatpush1.msra.mxu0 0.0
      %405 = vmatprep.subr.mxu0 0.0
      %406 = vmatpush1.msra.mxu0 0.0
      %407 = vmatprep.subr.mxu0 0.0
      %408 = vmatpush1.msra.mxu0 0.0
      %409 = vmatprep.subr.mxu0 0.0
      %410 = vmatpush1.msra.mxu0 0.0
      %411 = vmatprep.subr.mxu0 0.0
      %412 = vmatpush1.msra.mxu0 0.0
      %413 = vmatprep.subr.mxu0 0.0
      %414 = vmatpush1.msra.mxu0 0.0
      %415 = vmatprep.subr.mxu0 0.0
      %416 = vmatpush1.msra.mxu0 0.0
      %417 = vmatprep.subr.mxu0 0.0
      %418 = vmatpush1.msra.mxu0 0.0
      %419 = vmatprep.subr.mxu0 0.0
      %420 = vmatpush1.msra.mxu0 0.0
      %421 = vmatprep.subr.mxu0 0.0
      %422 = vmatpush1.msra.mxu0 0.0
      %423 = vmatprep.subr.mxu0 0.0
      %424 = vmatpush1.msra.mxu0 0.0
      %425 = vmatprep.subr.mxu0 0.0
      %426 = vmatpush1.msra.mxu0 0.0
      %427 = vmatprep.mubr.f32.mxu0 0.0
      %428 = vmatmul.mubr.f32.gmra.mrb[0].mxu0 %v351
      %v429 = vpop.f32.mrb[0].mxu0
      %v430 = vadd.f32 %v347, %v429
      %v431 = vpop.f32.mrb[0].mxu0
      %v432 = vadd.f32 %v347, %v431
      %433 = vdwg.mxu0
      %434 = vmatprep.subr.mxu0 0.0
      %435 = vmatpush1.msra.mxu0 %v331
      %436 = vmatprep.subr.mxu0 0.0
      %437 = vmatpush1.msra.mxu0 %v334
      %438 = vmatprep.subr.mxu0 0.0
      %439 = vmatpush1.msra.mxu0 %v337
      %440 = vmatprep.subr.mxu0 0.0
      %441 = vmatpush1.msra.mxu0 %v340
      %442 = vmatprep.subr.mxu0 0.0
      %443 = vmatpush1.msra.mxu0 %v361
      %444 = vmatprep.subr.mxu0 0.0
      %445 = vmatpush1.msra.mxu0 0.0
      %446 = vmatprep.subr.mxu0 0.0
      %447 = vmatpush1.msra.mxu0 0.0
      %448 = vmatprep.subr.mxu0 0.0
      %449 = vmatpush1.msra.mxu0 0.0
      %450 = vmatprep.subr.mxu0 0.0
      %451 = vmatpush1.msra.mxu0 0.0
      %452 = vmatprep.subr.mxu0 0.0
      %453 = vmatpush1.msra.mxu0 0.0
      %454 = vmatprep.subr.mxu0 0.0
      %455 = vmatpush1.msra.mxu0 0.0
      %456 = vmatprep.subr.mxu0 0.0
      %457 = vmatpush1.msra.mxu0 0.0
      %458 = vmatprep.subr.mxu0 0.0
      %459 = vmatpush1.msra.mxu0 0.0
      %460 = vmatprep.subr.mxu0 0.0
      %461 = vmatpush1.msra.mxu0 0.0
      %462 = vmatprep.subr.mxu0 0.0
      %463 = vmatpush1.msra.mxu0 0.0
      %464 = vmatprep.subr.mxu0 0.0
      %465 = vmatpush1.msra.mxu0 0.0
      %466 = vmatprep.subr.mxu0 0.0
      %467 = vmatpush1.msra.mxu0 0.0
      %468 = vmatprep.subr.mxu0 0.0
      %469 = vmatpush1.msra.mxu0 0.0
      %470 = vmatprep.subr.mxu0 0.0
      %471 = vmatpush1.msra.mxu0 0.0
      %472 = vmatprep.subr.mxu0 0.0
      %473 = vmatpush1.msra.mxu0 0.0
      %474 = vmatprep.subr.mxu0 0.0
      %475 = vmatpush1.msra.mxu0 0.0
      %476 = vmatprep.subr.mxu0 0.0
      %477 = vmatpush1.msra.mxu0 0.0
      %478 = vmatprep.subr.mxu0 0.0
      %479 = vmatpush1.msra.mxu0 0.0
      %480 = vmatprep.subr.mxu0 0.0
      %481 = vmatpush1.msra.mxu0 0.0
      %482 = vmatprep.subr.mxu0 0.0
      %483 = vmatpush1.msra.mxu0 0.0
      %484 = vmatprep.subr.mxu0 0.0
      %485 = vmatpush1.msra.mxu0 0.0
      %486 = vmatprep.subr.mxu0 0.0
      %487 = vmatpush1.msra.mxu0 0.0
      %488 = vmatprep.subr.mxu0 0.0
      %489 = vmatpush1.msra.mxu0 0.0
      %490 = vmatprep.subr.mxu0 0.0
      %491 = vmatpush1.msra.mxu0 0.0
      %492 = vmatprep.subr.mxu0 0.0
      %493 = vmatpush1.msra.mxu0 0.0
      %494 = vmatprep.subr.mxu0 0.0
      %495 = vmatpush1.msra.mxu0 0.0
      %496 = vmatprep.subr.mxu0 0.0
      %497 = vmatpush1.msra.mxu0 0.0
      %498 = vmatprep.mubr.f32.mxu0 0.0
      %499 = vmatmul.mubr.f32.gmra.mrb[0].mxu0 %v351
      %v500 = vpop.f32.mrb[0].mxu0
      %v501 = vadd.f32 %v347, %v500
      %v502 = vpop.f32.mrb[0].mxu0
      %503 = vdwg.mxu0
      %v504 = vmax.f32 %v430, 0.0
      %v505 = vmax.f32 %v432, 0.0
      %v506 = vmax.f32 %v501, 0.0
      %507 = vst [vmem:[%s170] sm:$0xff] %v504
      %508 = vst [vmem:[%s170 + $0x8] sm:$0xff] %v505
      %509 = vst [vmem:[%s170 + $0x10] sm:$0xff] %v506
      %p510 = scmp.lt.s32.totalorder %s14, 1
      %s511 = scalar_select %p510, %s14, 1
      %s512 = smul.addr %s511, 3
      %s513 = smul.addr %s512, 8
      %s514 = scalar_lea.vmem %s3, %s513
      // Predicated region
      $region33: #{_lambda_.1} parent=31 // pred_check
        %p515 = pneg %p100
      $region34: #{_lambda_.1} parent=31 // pred_check_branch
        %517 = sbr.rel (%p515) target = $region36
      $region35: #{_lambda_.1} parent=31 // pred_region
        _
      $region36: #{_lambda_.1} parent=31 // pred_fallthru
        _
    $region32: #{_lambda_.1} parent=5 // pred_fallthru
      _
    %p518 = scmp.le.s32.totalorder 2, %s9
    // Predicated region
    $region37: #{_lambda_.1} parent=5 // pred_check
      %p519 = pneg %p518
    $region38: #{_lambda_.1} parent=5 // pred_check_branch
      %521 = sbr.rel (%p519) target = $region40
    $region39: #{_lambda_.1} parent=5 // pred_region
      %s522 = ssub.s32 %s9, 2
      // Predicated region
      $region41: #{_lambda_.1} parent=39 // pred_check
        %p523 = pneg %p106
      $region42: #{_lambda_.1} parent=39 // pred_check_branch
        %525 = sbr.rel (%p523) target = $region44
      $region43: #{_lambda_.1} parent=39 // pred_region
        %p526 = scmp.lt.s32.totalorder %s15, 1
        %s527 = scalar_select %p526, %s15, 1
        %s528 = smul.addr %s527, 3
        %s529 = smul.addr %s528, 8
        %s530 = scalar_lea.vmem %s3, %s529
      $region44: #{_lambda_.1} parent=39 // pred_fallthru
        _
    $region40: #{_lambda_.1} parent=5 // pred_fallthru
      _
  $region6: #{_lambda_.1} parent=0 // loop_footer
    %s13 = sadd.s32 1, %s9
  $region7: #{_lambda_.1} parent=0 // loop_footer_branch
    %8 = sbr.rel target = $region3
  $region8: #{_lambda_.1} parent=0 // loop_exit
    _

</llo_original>
